<compile_context>
chip_gen: v6e
topology: v6e:2x2x1
jax: 0.10.0
libtpu: 0.0.40
codegen_flags: <defaults>
</compile_context>

<pallas_src>
import jax
import jax.numpy as jnp
from jax.experimental import pallas as pl
from jax.experimental.pallas import tpu as pltpu


def sfe_kernel(x_ref, w_ref, b_ref, g_ref, scores_ref, aux_ref):
    # ---- agent: Linear (MXU, bf16 in / f32 acc) + LogSoftmax --------------
    logits = jnp.dot(x_ref[...], w_ref[...], preferred_element_type=jnp.float32)
    logits = logits + b_ref[...]                        # (TB, V) + (1, V)

    m = jnp.max(logits, axis=-1, keepdims=True)
    z = logits - m
    e_z = jnp.exp(z)                                    # single exp pass (EUP)
    s = jnp.sum(e_z, axis=-1, keepdims=True)
    lse = jnp.log(s)
    scores = z - lse                                    # log-probabilities
    scores_ref[...] = scores

    # ---- Categorical entropy, reusing e_z:  H = lse - sum(e_z * z) / s ----
    ent = lse - jnp.sum(e_z * z, axis=-1, keepdims=True) / s        # (TB, 1)

    # ---- Categorical sample via Gumbel-max (noise supplied by caller) -----
    perturbed = z + g_ref[...]                          # argmax(z+g)==argmax(logp+g)
    mx = jnp.max(perturbed, axis=-1, keepdims=True)
    col = jax.lax.broadcasted_iota(jnp.int32, perturbed.shape, 1)
    idx = jnp.max(jnp.where(perturbed == mx, col, jnp.int32(-1)),
                  axis=-1, keepdims=True)               # (TB, 1) int32

    # ---- lane-dense packed epilogue: one unmasked (TB, 128) store ---------
    lane = jax.lax.broadcasted_iota(jnp.int32, aux_ref.shape, 1)
    aux_ref[...] = jnp.where(
        lane == 0, ent,
        jnp.where(lane == 1, idx.astype(jnp.float32), 0.0))


def sfe_forward(x, w, b, noise_key, *, block_b=256):
    """Returns (sample [B] int32, scores [B, V] f32, entropy [B] f32)."""
    B, D = x.shape
    V = w.shape[1]

    # Batch tiling: whole batch in one block when small, else 256-row tiles.
    TB = B if B <= block_b else block_b
    nb = (B + TB - 1) // TB
    B_pad = nb * TB

    x_p = x if B_pad == B else jnp.pad(x, ((0, B_pad - B), (0, 0)))
    x_bf = x_p.astype(jnp.bfloat16)
    w_bf = w.astype(jnp.bfloat16)
    b2 = b.reshape(1, V).astype(jnp.float32)
    gumbel = jax.random.gumbel(noise_key, (B_pad, V), dtype=jnp.float32)

    out_shapes = (
        jax.ShapeDtypeStruct((B_pad, V), jnp.float32),    # scores (log-probs)
        jax.ShapeDtypeStruct((B_pad, 128), jnp.float32),  # packed: [:,0]=H, [:,1]=sample
    )
    grid_spec = pltpu.PrefetchScalarGridSpec(
        num_scalar_prefetch=0,
        grid=(nb,),
        in_specs=[
            pl.BlockSpec((TB, D), lambda i: (i, 0)),   # x tile
            pl.BlockSpec((D, V), lambda i: (0, 0)),    # W (resident)
            pl.BlockSpec((1, V), lambda i: (0, 0)),    # bias
            pl.BlockSpec((TB, V), lambda i: (i, 0)),   # gumbel noise tile
        ],
        out_specs=[
            pl.BlockSpec((TB, V), lambda i: (i, 0)),
            pl.BlockSpec((TB, 128), lambda i: (i, 0)),
        ],
    )
    scores, aux = pl.pallas_call(
        sfe_kernel,
        out_shape=out_shapes,
        grid_spec=grid_spec,
        compiler_params=pltpu.CompilerParams(
            dimension_semantics=("parallel",)),
    )(x_bf, w_bf, b2, gumbel)

    entropy = aux[:B, 0]
    sample = aux[:B, 1].astype(jnp.int32)
    return sample, scores[:B], entropy


if __name__ == "__main__":
    B, D, V = 8, 32, 128   # batch, agent input features, number of classes

    key = jax.random.PRNGKey(0)
    kx, kw, kb, kn = jax.random.split(key, 4)
    x = jax.random.normal(kx, (B, D), dtype=jnp.float32)
    # Deterministic agent parameters (Linear(D, V)): weight [D, V], bias [V].
    w = jax.random.normal(kw, (D, V), dtype=jnp.float32) * (1.0 / jnp.sqrt(D))
    b = jax.random.normal(kb, (V,), dtype=jnp.float32) * 0.01

    sample, scores, entropy = sfe_forward(x, w, b, kn)
    jax.block_until_ready((sample, scores, entropy))

    # Semantics checks mirroring the PyTorch docstring.
    assert sample.shape == (B,)
    assert scores.shape == (B, V)
    assert entropy.shape == (B,)
    assert bool(jnp.all(scores < 0.0))                 # log-probs are negative
    assert bool(jnp.all(entropy > 0.0))                # entropy is positive
    assert bool(jnp.all((sample >= 0) & (sample < V)))
    # scores must be normalized log-probs: logsumexp ≈ 0
    assert bool(jnp.all(jnp.abs(jax.scipy.special.logsumexp(scores, axis=-1)) < 1e-4))

    print("KERNEL_OK")
</pallas_src>

<mosaic_0001>
module attributes {stable_mosaic.version = 11 : i64} {
  func.func @sfe_kernel(%arg0: i32, %arg1: memref<8x32xbf16, #tpu.memory_space<vmem>>, %arg2: memref<32x128xbf16, #tpu.memory_space<vmem>>, %arg3: memref<1x128xf32, #tpu.memory_space<vmem>>, %arg4: memref<8x128xf32, #tpu.memory_space<vmem>>, %arg5: memref<8x128xf32, #tpu.memory_space<vmem>>, %arg6: memref<8x128xf32, #tpu.memory_space<vmem>>) attributes {dimension_semantics = [#tpu.dimension_semantics<parallel>], iteration_bounds = array<i64: 1>, scalar_prefetch = 0 : i64, scratch_operands = 0 : i64, tpu.core_type = #tpu.core_type<tc>, window_params = [{transform_indices = @transform_0, window_bounds = array<i64: 8, 32>}, {pipeline_mode = #tpu.pipeline_mode<synchronous>, transform_indices = @transform_1, window_bounds = array<i64: 32, 128>}, {pipeline_mode = #tpu.pipeline_mode<synchronous>, transform_indices = @transform_2, window_bounds = array<i64: 1, 128>}, {transform_indices = @transform_3, window_bounds = array<i64: 8, 128>}, {transform_indices = @transform_4, window_bounds = array<i64: 8, 128>}, {transform_indices = @transform_5, window_bounds = array<i64: 8, 128>}]} {
    %c0 = arith.constant 0 : index
    %c0_0 = arith.constant 0 : index
    %0 = vector.load %arg1[%c0, %c0_0] : memref<8x32xbf16, #tpu.memory_space<vmem>>, vector<8x32xbf16>
    %c0_1 = arith.constant 0 : index
    %c0_2 = arith.constant 0 : index
    %1 = vector.load %arg2[%c0_1, %c0_2] : memref<32x128xbf16, #tpu.memory_space<vmem>>, vector<32x128xbf16>
    %cst = arith.constant dense<0.000000e+00> : vector<8x128xf32>
    %2 = tpu.matmul %0, %1, %cst {dimension_numbers = #tpu.dot_dimension_numbers<[1], [0], [0], [1], [0, 0, 1, 1], [], []>} : vector<8x32xbf16>, vector<32x128xbf16>, vector<8x128xf32> -> vector<8x128xf32>
    %c0_3 = arith.constant 0 : index
    %c0_4 = arith.constant 0 : index
    %3 = vector.load %arg3[%c0_3, %c0_4] : memref<1x128xf32, #tpu.memory_space<vmem>>, vector<1x128xf32>
    %4 = vector.broadcast %3 : vector<1x128xf32> to vector<8x128xf32>
    %5 = arith.addf %2, %4 : vector<8x128xf32>
    %cst_5 = arith.constant dense<0xFF800000> : vector<8xf32>
    %6 = vector.multi_reduction <maximumf>, %5, %cst_5 [1] : vector<8x128xf32> to vector<8xf32>
    %7 = vector.shape_cast %6 : vector<8xf32> to vector<8x1xf32>
    %8 = vector.broadcast %7 : vector<8x1xf32> to vector<8x128xf32>
    %9 = arith.subf %5, %8 : vector<8x128xf32>
    %10 = math.exp %9 : vector<8x128xf32>
    %cst_6 = arith.constant dense<0.000000e+00> : vector<8xf32>
    %11 = vector.multi_reduction <add>, %10, %cst_6 [1] : vector<8x128xf32> to vector<8xf32>
    %12 = vector.shape_cast %11 : vector<8xf32> to vector<8x1xf32>
    %13 = math.log %12 : vector<8x1xf32>
    %14 = vector.broadcast %13 : vector<8x1xf32> to vector<8x128xf32>
    %15 = arith.subf %9, %14 : vector<8x128xf32>
    %c0_7 = arith.constant 0 : index
    %c0_8 = arith.constant 0 : index
    %16 = vector.load %arg5[%c0_7, %c0_8] : memref<8x128xf32, #tpu.memory_space<vmem>>, vector<8x128xf32>
    tpu.vector_store %arg5[%c0_7, %c0_8], %15 {strides = array<i32>} : memref<8x128xf32, #tpu.memory_space<vmem>>, vector<8x128xf32>,
    %17 = arith.mulf %10, %9 : vector<8x128xf32>
    %cst_9 = arith.constant dense<0.000000e+00> : vector<8xf32>
    %18 = vector.multi_reduction <add>, %17, %cst_9 [1] : vector<8x128xf32> to vector<8xf32>
    %19 = vector.shape_cast %18 : vector<8xf32> to vector<8x1xf32>
    %20 = arith.divf %19, %12 : vector<8x1xf32>
    %21 = arith.subf %13, %20 : vector<8x1xf32>
    %c0_10 = arith.constant 0 : index
    %c0_11 = arith.constant 0 : index
    %22 = vector.load %arg4[%c0_10, %c0_11] : memref<8x128xf32, #tpu.memory_space<vmem>>, vector<8x128xf32>
    %23 = arith.addf %9, %22 : vector<8x128xf32>
    %cst_12 = arith.constant dense<0xFF800000> : vector<8xf32>
    %24 = vector.multi_reduction <maximumf>, %23, %cst_12 [1] : vector<8x128xf32> to vector<8xf32>
    %25 = vector.shape_cast %24 : vector<8xf32> to vector<8x1xf32>
    %26 = tpu.iota {dimensions = array<i32: 1>} : vector<8x128xi32>
    %27 = vector.broadcast %25 : vector<8x1xf32> to vector<8x128xf32>
    %28 = arith.cmpf oeq, %23, %27 : vector<8x128xf32>
    %c-1_i32 = arith.constant -1 : i32
    %29 = vector.broadcast %c-1_i32 : i32 to vector<8x128xi32>
    %30 = arith.select %28, %26, %29 : vector<8x128xi1>, vector<8x128xi32>
    %cst_13 = arith.constant dense<-2147483648> : vector<8xi32>
    %31 = vector.multi_reduction <maxsi>, %30, %cst_13 [1] : vector<8x128xi32> to vector<8xi32>
    %32 = vector.shape_cast %31 : vector<8xi32> to vector<8x1xi32>
    %33 = tpu.iota {dimensions = array<i32: 1>} : vector<8x128xi32>
    %c0_i32 = arith.constant 0 : i32
    %34 = vector.broadcast %c0_i32 : i32 to vector<8x128xi32>
    %35 = arith.cmpi eq, %33, %34 : vector<8x128xi32>
    %c1_i32 = arith.constant 1 : i32
    %36 = vector.broadcast %c1_i32 : i32 to vector<8x128xi32>
    %37 = arith.cmpi eq, %33, %36 : vector<8x128xi32>
    %38 = arith.sitofp %32 : vector<8x1xi32> to vector<8x1xf32>
    %cst_14 = arith.constant 0.000000e+00 : f32
    %39 = vector.shape_cast %38 : vector<8x1xf32> to vector<8x1xf32>
    %40 = vector.broadcast %39 : vector<8x1xf32> to vector<8x128xf32>
    %41 = vector.broadcast %cst_14 : f32 to vector<8x128xf32>
    %42 = arith.select %37, %40, %41 : vector<8x128xi1>, vector<8x128xf32>
    %43 = vector.shape_cast %21 : vector<8x1xf32> to vector<8x1xf32>
    %44 = vector.broadcast %43 : vector<8x1xf32> to vector<8x128xf32>
    %45 = arith.select %35, %44, %42 : vector<8x128xi1>, vector<8x128xf32>
    %c0_15 = arith.constant 0 : index
    %c0_16 = arith.constant 0 : index
    %46 = vector.load %arg6[%c0_15, %c0_16] : memref<8x128xf32, #tpu.memory_space<vmem>>, vector<8x128xf32>
    tpu.vector_store %arg6[%c0_15, %c0_16], %45 {strides = array<i32>} : memref<8x128xf32, #tpu.memory_space<vmem>>, vector<8x128xf32>,
    return
  }
  func.func @transform_0(%arg0: i32) -> (i32, i32) {
    %c0_i32 = arith.constant 0 : i32
    %c0_i32_0 = arith.constant 0 : i32
    return %arg0, %c0_i32 : i32, i32
  }
  func.func @transform_1(%arg0: i32) -> (i32, i32) {
    %c0_i32 = arith.constant 0 : i32
    %c0_i32_0 = arith.constant 0 : i32
    %c0_i32_1 = arith.constant 0 : i32
    return %c0_i32, %c0_i32_0 : i32, i32
  }
  func.func @transform_2(%arg0: i32) -> (i32, i32) {
    %c0_i32 = arith.constant 0 : i32
    %c0_i32_0 = arith.constant 0 : i32
    %c0_i32_1 = arith.constant 0 : i32
    return %c0_i32, %c0_i32_0 : i32, i32
  }
  func.func @transform_3(%arg0: i32) -> (i32, i32) {
    %c0_i32 = arith.constant 0 : i32
    %c0_i32_0 = arith.constant 0 : i32
    return %arg0, %c0_i32 : i32, i32
  }
  func.func @transform_4(%arg0: i32) -> (i32, i32) {
    %c0_i32 = arith.constant 0 : i32
    %c0_i32_0 = arith.constant 0 : i32
    return %arg0, %c0_i32 : i32, i32
  }
  func.func @transform_5(%arg0: i32) -> (i32, i32) {
    %c0_i32 = arith.constant 0 : i32
    %c0_i32_0 = arith.constant 0 : i32
    return %arg0, %c0_i32 : i32, i32
  }
}

</mosaic_0001>

<llo_original>
// kernel: tpu_custom_call.1
$region0: #{tpu_custom_call.1}
  #allocation0 [shape = 'u32[]', space=smem, size = 0x4, offset = 0x4, fixed_abs, tag = 'smem constant byte address 0x4 - core index']
  #allocation1 [shape = 'u32[144,128]{1,0:T(1,128)}', space=vmem, size = 0x12000, scoped, tag = 'internal scratch']
  %s0 = inlined_call_operand.hbm [shape: bf16[8,32], index: 0, kind: input, shape index: {}]
  %s1 = inlined_call_operand.hbm [shape: bf16[32,128], index: 1, kind: input, shape index: {}]
  %s2 = inlined_call_operand.vmem [shape: f32[1,128], index: 2, kind: input, shape index: {}]
  %s3 = inlined_call_operand.hbm [shape: f32[8,128], index: 3, kind: input, shape index: {}]
  %s4 = inlined_call_operand.hbm [shape: f32[8,128], index: 4, kind: output, shape index: {0}]
  %s5 = inlined_call_operand.hbm [shape: f32[8,128], index: 5, kind: output, shape index: {1}]
  %6 = xla_tuple %s4, %s5
  %s7 = sld [smem:[#allocation0]]
  $region46: #{tpu_custom_call.1} parent=0
    _
  %s9 = ssub.s32 1, %s7
  %s10 = scalar_select 0, %s9, %s7
  $region1: #{tpu_custom_call.1} parent=0
    #allocation2 [shape = 'u8[2048]{0}', space=vmem, size = 0x800, scoped, tag = 'input window, operand 0, single buffered']
    #allocation3 [shape = 's32[1]{0}', space=sflag, size = 0x4, scoped, tag = 'scoped memory for tpu_custom_call.1']
    #allocation4 [shape = 's32[1]{0}', space=sflag, size = 0x4, scoped, tag = 'scoped memory for tpu_custom_call.1']
    #allocation5 [shape = 'u8[8192]{0}', space=vmem, size = 0x2000, scoped, tag = 'input window, operand 1, single buffered']
    #allocation6 [shape = 's32[1]{0}', space=sflag, size = 0x4, scoped, tag = 'scoped memory for tpu_custom_call.1']
    #allocation7 [shape = 'u8[4096]{0}', space=vmem, size = 0x1000, scoped, tag = 'input window, operand 3, single buffered']
    #allocation8 [shape = 'u8[4096]{0}', space=vmem, size = 0x1000, scoped, tag = 'output window, operand 0, single buffered']
    #allocation9 [shape = 'u8[4096]{0}', space=vmem, size = 0x1000, scoped, tag = 'output window, operand 1, single buffered']
    #allocation10 [shape = 's32[1]{0}', space=sflag, size = 0x4, scoped, tag = 'scoped memory for tpu_custom_call.1']
    %11 = vsyncpa [#allocation3], 0
    %12 = vsyncpa [#allocation6], 0
    %13 = vsyncpa [#allocation4], 0
    %14 = vsyncpa [#allocation10], 0
    // Predicated region
    $region2: #{tpu_custom_call.1} parent=1 // pred_check
      _
    $region3: #{tpu_custom_call.1} parent=1 // pred_check_branch
      %16 = sbr.rel (0) target = $region5
    $region4: #{tpu_custom_call.1} parent=1 // pred_region
      %s18 = ssub.s32 64, 64
      %19 = vsyncadd [#allocation3], %s18
      %s21 = sshll.u32 [#allocation2], 4
      %s22 = int_to_ptr.vmem [resolvable:$true] %s21
      %24 = dma.hbm_to_vmem [thread:$0]  %s0, 64, %s22, [#allocation3]
    $region5: #{tpu_custom_call.1} parent=1 // pred_fallthru
      _
    // Predicated region
    $region6: #{tpu_custom_call.1} parent=1 // pred_check
      _
    $region7: #{tpu_custom_call.1} parent=1 // pred_check_branch
      %26 = sbr.rel (0) target = $region9
    $region8: #{tpu_custom_call.1} parent=1 // pred_region
      %s28 = ssub.s32 256, 256
      %29 = vsyncadd [#allocation6], %s28
      %s30 = sshll.u32 [#allocation5], 4
      %s31 = int_to_ptr.vmem [resolvable:$true] %s30
      %36 = dma.hbm_to_vmem [thread:$0]  %s1, 256, %s31, [#allocation6], 64, 64, 4
    $region9: #{tpu_custom_call.1} parent=1 // pred_fallthru
      _
    // Predicated region
    $region10: #{tpu_custom_call.1} parent=1 // pred_check
      _
    $region11: #{tpu_custom_call.1} parent=1 // pred_check_branch
      %38 = sbr.rel (0) target = $region13
    $region12: #{tpu_custom_call.1} parent=1 // pred_region
      _
    $region13: #{tpu_custom_call.1} parent=1 // pred_fallthru
      _
    // Predicated region
    $region14: #{tpu_custom_call.1} parent=1 // pred_check
      _
    $region15: #{tpu_custom_call.1} parent=1 // pred_check_branch
      %40 = sbr.rel (0) target = $region17
    $region16: #{tpu_custom_call.1} parent=1 // pred_region
      %s42 = ssub.s32 128, 128
      %43 = vsyncadd [#allocation6], %s42
      %s45 = sshll.u32 [#allocation7], 4
      %s46 = int_to_ptr.vmem [resolvable:$true] %s45
      %48 = dma.hbm_to_vmem [thread:$0]  %s3, 128, %s46, [#allocation6]
    $region17: #{tpu_custom_call.1} parent=1 // pred_fallthru
      _
    // Predicated region
    $region18: #{tpu_custom_call.1} parent=1 // pred_check
      _
    $region19: #{tpu_custom_call.1} parent=1 // pred_check_branch
      %50 = sbr.rel (0) target = $region21
    $region20: #{tpu_custom_call.1} parent=1 // pred_region
      %51 = dma.done [#allocation3], 64
    $region21: #{tpu_custom_call.1} parent=1 // pred_fallthru
      _
    // Predicated region
    $region22: #{tpu_custom_call.1} parent=1 // pred_check
      _
    $region23: #{tpu_custom_call.1} parent=1 // pred_check_branch
      %53 = sbr.rel (0) target = $region25
    $region24: #{tpu_custom_call.1} parent=1 // pred_region
      %54 = dma.done [#allocation6], 256
    $region25: #{tpu_custom_call.1} parent=1 // pred_fallthru
      _
    // Predicated region
    $region26: #{tpu_custom_call.1} parent=1 // pred_check
      _
    $region27: #{tpu_custom_call.1} parent=1 // pred_check_branch
      %56 = sbr.rel (0) target = $region29
    $region28: #{tpu_custom_call.1} parent=1 // pred_region
      %57 = dma.done [#allocation6], 128
    $region29: #{tpu_custom_call.1} parent=1 // pred_fallthru
      _
    %v59 = vld [vmem:[#allocation2] sm:$0xf]
    %v60 = vld [vmem:[#allocation5] sm:$0xf]
    %v61 = vld [vmem:[#allocation5 + $0x4] sm:$0xf]
    %v62 = vld [vmem:[#allocation5 + $0x8] sm:$0xf]
    %v63 = vld [vmem:[#allocation5 + $0xc] sm:$0xf]
    %v64 = vld [vmem:[%s2] sm:$0x1]
    %v66 = vlaneseq
    %v67 = vshrl.u32 %v66, 7
    %v68 = vsub.s32 0, %v67
    %v69 = vrot.slane %v64, %v68
    %v75 = vunpack.c.l.b16 %v60
    %v76 = vunpack.c.l.b16 %v61
    %v77 = vunpack.c.l.b16 %v62
    %v78 = vunpack.c.l.b16 %v63
    %v79 = vpack.c.b16 %v76, %v75
    %v80 = vpack.c.b16 %v78, %v77
    %vm83 = vcmask 261120
    %v85 = vsel %vm83, %v59, 0
    %87 = vmatprep.subr.bf16.mxu0 0
    %88 = vmatpush1.bf16.msra.mxu0 0
    %89 = vmatprep.subr.bf16.mxu0 0
    %90 = vmatpush1.bf16.msra.mxu0 0
    %91 = vmatprep.subr.bf16.mxu0 0
    %92 = vmatpush1.bf16.msra.mxu0 0
    %93 = vmatprep.subr.bf16.mxu0 0
    %94 = vmatpush1.bf16.msra.mxu0 0
    %95 = vmatprep.subr.bf16.mxu0 0
    %96 = vmatpush1.bf16.msra.mxu0 0
    %97 = vmatprep.subr.bf16.mxu0 0
    %98 = vmatpush1.bf16.msra.mxu0 0
    %99 = vmatprep.subr.bf16.mxu0 0
    %100 = vmatpush1.bf16.msra.mxu0 %v80
    %101 = vmatprep.subr.bf16.mxu0 0
    %102 = vmatpush1.bf16.msra.mxu0 %v79
    %103 = vmatprep.subr.bf16.mxu0 0
    %104 = vmatpush2.bf16.msra.mxu0 0
    %105 = vmatprep.subr.bf16.mxu0 0
    %106 = vmatpush2.bf16.msra.mxu0 0
    %107 = vmatprep.subr.bf16.mxu0 0
    %108 = vmatpush2.bf16.msra.mxu0 0
    %109 = vmatprep.subr.bf16.mxu0 0
    %110 = vmatpush2.bf16.msra.mxu0 0
    %111 = vmatprep.subr.bf16.mxu0 0
    %112 = vmatpush2.bf16.msra.mxu0 0
    %113 = vmatprep.subr.bf16.mxu0 0
    %114 = vmatpush2.bf16.msra.mxu0 0
    %115 = vmatprep.subr.bf16.mxu0 0
    %116 = vmatpush2.bf16.msra.mxu0 0
    %117 = vmatprep.subr.bf16.mxu0 0
    %118 = vmatpush2.bf16.msra.mxu0 0
    %119 = vmatprep.mubr.bf16.mxu0 0
    %120 = vmatmul.mubr.bf16.gmra.mxu0 %v85
    %v121 = vpop.f32.mrf.mxu0
    %v122 = vadd.f32 %v69, %v121
    %v123 = vpop.f32.mrf.mxu0
    %v124 = vpop.f32.mrf.mxu0
    %v125 = vpop.f32.mrf.mxu0
    %126 = vdwg.mxu0
    %127 = vmax.xlane.f32.xlu0 %v122
    %v128 = vpop.xlane.xlu0 %127
    %v129 = vsub.f32 %v122, %v128
    %v130 = vmul.f32 %v129, 1.442695
    %v131 = vpow.pop %v130
    %132 = vadd.xlane.f32.xlu0 %v131
    %v133 = vpop.xlane.xlu0 %132
    %v134 = vlog2.pop %v133
    %v135 = vmul.f32 %v134, 0.6931472
    %v136 = vsub.f32 %v129, %v135
    %137 = vst [vmem:[#allocation8] sm:$0xff] %v136
    %v138 = vmul.f32 %v131, %v129
    %139 = vadd.xlane.f32.xlu0 %v138
    %v140 = vpop.xlane.xlu0 %139
    %v141 = vrcp.pop %v133
    %v142 = vmul.f32 %v140, %v141
    %v143 = vsub.f32 %v135, %v142
    %v144 = vld [vmem:[#allocation7] sm:$0xff]
    %v145 = vadd.f32 %v129, %v144
    %146 = vmax.xlane.f32.xlu0 %v145
    %v147 = vpop.xlane.xlu0 %146
    %v148 = vlaneseq
    %v149 = vand.u32 %v148, 127
    %vm150 = vcmp.eq.f32.partialorder %v145, %v147
    %v151 = vsel %vm150, %v149, 4294967295
    %v152 = vand.u32 %v151, 65535
    %v153 = vshra.s32 %v151, 16
    %v154 = vcvt.s32.f32 %v152
    %v155 = vcvt.s32.f32 %v153
    %156 = vmax.xlane.f32.xlu0 %v155
    %v157 = vpop.xlane.xlu0 %156
    %vm158 = vcmp.eq.f32.partialorder %v155, %v157
    %v159 = vsel %vm158, %v154, -inf
    %160 = vmax.xlane.f32.xlu0 %v159
    %v161 = vpop.xlane.xlu0 %160
    %v162 = vcvt.f32.s32 %v161
    %v163 = vcvt.f32.s32 %v157
    %v164 = vshll.u32 %v163, 16
    %v165 = vadd.s32 %v164, %v162
    %vm166 = vcmp.eq.s32.totalorder %v149, 0
    %vm167 = vcmp.eq.s32.totalorder %v149, 1
    %v168 = vcvt.s32.f32 %v165
    %v169 = vsel %vm167, %v168, 0.0
    %v170 = vsel %vm166, %v143, %v169
    %171 = vst [vmem:[#allocation9] sm:$0xff] %v170
    // Predicated region
    $region30: #{tpu_custom_call.1} parent=1 // pred_check
      _
    $region31: #{tpu_custom_call.1} parent=1 // pred_check_branch
      %173 = sbr.rel (0) target = $region33
    $region32: #{tpu_custom_call.1} parent=1 // pred_region
      %s175 = ssub.s32 128, 128
      %176 = vsyncadd [#allocation4], %s175
      %s178 = sshll.u32 [#allocation8], 4
      %s179 = int_to_ptr.vmem [resolvable:$true] %s178
      %181 = dma.vmem_to_hbm [thread:$0]  %s179, 128, %s4, [#allocation4]
    $region33: #{tpu_custom_call.1} parent=1 // pred_fallthru
      _
    // Predicated region
    $region34: #{tpu_custom_call.1} parent=1 // pred_check
      _
    $region35: #{tpu_custom_call.1} parent=1 // pred_check_branch
      %183 = sbr.rel (0) target = $region37
    $region36: #{tpu_custom_call.1} parent=1 // pred_region
      %s185 = ssub.s32 128, 128
      %186 = vsyncadd [#allocation10], %s185
      %s188 = sshll.u32 [#allocation9], 4
      %s189 = int_to_ptr.vmem [resolvable:$true] %s188
      %191 = dma.vmem_to_hbm [thread:$0]  %s189, 128, %s5, [#allocation10]
    $region37: #{tpu_custom_call.1} parent=1 // pred_fallthru
      _
    // Predicated region
    $region38: #{tpu_custom_call.1} parent=1 // pred_check
      _
    $region39: #{tpu_custom_call.1} parent=1 // pred_check_branch
      %193 = sbr.rel (0) target = $region41
    $region40: #{tpu_custom_call.1} parent=1 // pred_region
      %194 = dma.done [#allocation4], 128
    $region41: #{tpu_custom_call.1} parent=1 // pred_fallthru
      _
    // Predicated region
    $region42: #{tpu_custom_call.1} parent=1 // pred_check
      _
    $region43: #{tpu_custom_call.1} parent=1 // pred_check_branch
      %196 = sbr.rel (0) target = $region45
    $region44: #{tpu_custom_call.1} parent=1 // pred_region
      %197 = dma.done [#allocation10], 128
    $region45: #{tpu_custom_call.1} parent=1 // pred_fallthru
      _
    %198 = vsyncpa [#allocation3], 1
    %199 = vsyncpa [#allocation6], 1
    %200 = vsyncpa [#allocation4], 1
    %201 = vsyncpa [#allocation10], 1

</llo_original>
